<compile_context>
chip_gen: v7x
topology: tpu7x:2x2x1
jax: 0.10.0
libtpu: 0.0.40
codegen_flags: <defaults>
</compile_context>

<pallas_src>
import jax
import jax.numpy as jnp
from jax.experimental import pallas as pl
from jax.experimental.pallas import tpu as pltpu


def _round_up(x, m):
    return (x + m - 1) // m * m


_K_TILE = 512            # K chunk when d_in is large (multiple of 128)
_K_TILE_FULL_MAX = 2048  # keep K un-tiled up to this many input features
_N_TILE_FULL_MAX = 2048  # hold the full (padded) D_out resident up to this width


# ------------------------------------------------------------------ kernels --
def _linear_kernel_fused(x_ref, w_ref, b_ref, o_ref):
    """Single-K-tile path: one bf16 MXU matmul + f32 bias add per (i, j) tile."""
    acc = jnp.dot(x_ref[...], w_ref[...], preferred_element_type=jnp.float32)
    o_ref[...] = (acc + b_ref[...].astype(jnp.float32)).astype(o_ref.dtype)


def _linear_kernel_ktiled(x_ref, w_ref, b_ref, o_ref, acc_ref):
    """K-tiled path: accumulate partial products in an f32 VMEM scratch."""
    k = pl.program_id(2)

    @pl.when(k == 0)
    def _init():
        acc_ref[...] = jnp.zeros_like(acc_ref)

    acc_ref[...] += jnp.dot(x_ref[...], w_ref[...],
                            preferred_element_type=jnp.float32)

    @pl.when(k == pl.num_programs(2) - 1)
    def _finish():
        o_ref[...] = (acc_ref[...] + b_ref[...].astype(jnp.float32)
                      ).astype(o_ref.dtype)


# ----------------------------------------------------------------- sizing ----
def _vmem_budget():
    """(data_budget_bytes, vmem_limit_bytes), sized per TPU generation."""
    cap = 64 << 20  # conservative fallback == v7x physical VMEM per TensorCore
    try:
        info = pltpu.get_tpu_info()
        cap = int(getattr(info, "vmem_capacity_bytes", cap))
    except Exception:
        pass
    # ~75% of physical for the double-buffered data tiles, ~85% as the scoped
    # limit (headroom for Mosaic internal scratch / spills):
    #   v5e/v6e (128 MiB): ~96 MiB data / ~109 MiB limit
    #   v7x     ( 64 MiB): ~48 MiB data / ~54  MiB limit
    return int(cap * 0.75), int(cap * 0.85)


def _choose_tiles(n, d_out_p, tk, budget_bytes, in_bytes, out_bytes):
    """Pick (tm, tn): large batch tiles, full D_out resident when it fits."""
    tn = d_out_p if d_out_p <= _N_TILE_FULL_MAX else 512
    n_al = _round_up(n, 8)

    def footprint(tm_, tn_):
        return (2 * tm_ * tk * in_bytes        # x blocks (double-buffered, bf16)
                + 2 * tk * tn_ * in_bytes      # W blocks (double-buffered, bf16)
                + 2 * tm_ * tn_ * out_bytes    # out blocks (double-buffered)
                + tm_ * tn_ * 4                # f32 accumulator scratch
                + 2 * tn_ * 4)                 # bias

    tm = min(2048, n_al)
    while tm > 8 and footprint(tm, tn) > budget_bytes:
        tm = max(8, (tm // 2 + 7) // 8 * 8)
    while tn > 128 and footprint(tm, tn) > budget_bytes:
        tn = max(128, _round_up(tn // 2, 128))
    return tm, tn


# ---------------------------------------------------------------- forward ----
def _linear_forward(x, w_p, b_p, *, d_out, d_in_p, tk, compute_dtype):
    n, d_in = x.shape
    d_out_p = w_p.shape[1]
    out_dtype = x.dtype

    # bf16 MXU operands, f32 accumulation (preferred_element_type in kernel).
    x = x.astype(compute_dtype)
    if d_in_p != d_in:
        # Zero K-padding matches the zero rows padded into W at init.
        x = jnp.pad(x, ((0, 0), (0, d_in_p - d_in)))

    in_bytes = jnp.dtype(compute_dtype).itemsize
    out_bytes = jnp.dtype(out_dtype).itemsize

    data_budget, vmem_limit = _vmem_budget()
    tm, tn = _choose_tiles(n, d_out_p, tk, data_budget, in_bytes, out_bytes)

    m_tiles = pl.cdiv(n, tm)          # ragged last batch tile: OOB stores dropped
    n_tiles = pl.cdiv(d_out_p, tn)
    k_tiles = d_in_p // tk            # exact: d_in padded to a multiple of tk

    # Grid order: batch tiles OUTERMOST (v7x megacore always has a parallel
    # axis with extent > 1, even when n_tiles == 1), D_out tiles next,
    # K innermost reduction ("arbitrary").
    grid = (m_tiles, n_tiles, k_tiles)

    cost = pl.CostEstimate(
        flops=2 * n * d_in_p * d_out_p,
        transcendentals=0,
        bytes_accessed=(n_tiles * n * d_in_p * in_bytes          # x re-read / N tile
                        + m_tiles * d_in_p * d_out_p * in_bytes  # W re-read / M tile
                        + n * d_out_p * out_bytes                # output writeback
                        + d_out_p * 4),                          # bias
    )

    in_specs = [
        pl.BlockSpec((tm, tk), lambda i, j, k: (i, k)),   # x rows
        pl.BlockSpec((tk, tn), lambda i, j, k: (k, j)),   # W slab
        pl.BlockSpec((1, tn), lambda i, j, k: (0, j)),    # bias slab (f32)
    ]
    out_spec = pl.BlockSpec((tm, tn), lambda i, j, k: (i, j))

    if k_tiles == 1:
        kernel = _linear_kernel_fused
        scratch = []
    else:
        kernel = _linear_kernel_ktiled
        scratch = [pltpu.VMEM((tm, tn), jnp.float32)]

    out = pl.pallas_call(
        kernel,
        out_shape=jax.ShapeDtypeStruct((n, d_out_p), out_dtype),
        grid_spec=pltpu.PrefetchScalarGridSpec(
            num_scalar_prefetch=0,
            grid=grid,
            in_specs=in_specs,
            out_specs=out_spec,
            scratch_shapes=scratch,
        ),
        compiler_params=pltpu.CompilerParams(
            dimension_semantics=("parallel", "parallel", "arbitrary"),
            vmem_limit_bytes=vmem_limit,
        ),
        cost_estimate=cost,
    )(x, w_p, b_p)

    if d_out_p != d_out:
        out = out[:, :d_out]   # lazy slice of the lane-dense padded buffer
    return out


class PallasLinearWrapper:
    """Pallas port of `Wrapper(nn.Linear(d_in, d_out), chunk_size)`.

    The torch Wrapper splits x along dim 0 into `chunk_size`-row chunks, runs
    the wrapped module on each, and concatenates.  nn.Linear acts row-wise, so
    any chunking is numerically identical; `chunk_size` is kept for API parity
    while the kernel tiles the batch dim with MXU-sized tiles.

    D_out lane-padding, D_in padding for K-tiling, and the bf16 cast of W are
    all paid ONCE here, not per forward call.
    """

    def __init__(self, w, b, chunk_size, *, compute_dtype=jnp.bfloat16):
        self.chunk_size = chunk_size          # API parity only (row-wise module)
        self.compute_dtype = compute_dtype
        d_in, d_out = w.shape
        self.d_out = d_out

        # K tiling decision (bounds VMEM independent of d_in).
        if d_in <= _K_TILE_FULL_MAX:
            self.tk = d_in
            d_in_p = d_in
        else:
            self.tk = _K_TILE
            d_in_p = _round_up(d_in, _K_TILE)
        self.d_in_p = d_in_p

        # Lane-dense output: pad D_out to a multiple of 128 (unmasked stores).
        d_out_p = _round_up(d_out, 128)

        w = jnp.pad(w, ((0, d_in_p - d_in), (0, d_out_p - d_out)))
        b = jnp.pad(b.reshape(1, -1), ((0, 0), (0, d_out_p - d_out)))
        self.w = w.astype(compute_dtype)      # bf16 MXU operand, padded once
        self.b = b.astype(jnp.float32)        # bias add stays f32

    def __call__(self, x):
        return _linear_forward(
            x, self.w, self.b,
            d_out=self.d_out, d_in_p=self.d_in_p, tk=self.tk,
            compute_dtype=self.compute_dtype)


if __name__ == "__main__":
    key = jax.random.PRNGKey(0)
    kx, kw, kb = jax.random.split(key, 3)

    N, D_IN, D_OUT = 16, 32, 64
    CHUNK_SIZE = 8  # torch: Wrapper(nn.Linear(D_IN, D_OUT), chunk_size=8)

    x = jax.random.normal(kx, (N, D_IN), dtype=jnp.float32)
    # Deterministic "module" parameters (nn.Linear(D_IN, D_OUT)).
    w = jax.random.normal(kw, (D_IN, D_OUT), dtype=jnp.float32) * 0.05
    b = jax.random.normal(kb, (1, D_OUT), dtype=jnp.float32) * 0.05

    wrapper = PallasLinearWrapper(w, b, CHUNK_SIZE)
    out = jax.block_until_ready(wrapper(x))

    # Reference: chunk-by-chunk application + concat equals full-batch
    # application for a row-wise module.
    ref = x @ w + b
    assert out.shape == (N, D_OUT), out.shape
    assert out.dtype == x.dtype
    # bf16 MXU operands with f32 accumulation -> loose-ish tolerance.
    assert jnp.allclose(out, ref, atol=3e-2, rtol=3e-2), float(
        jnp.max(jnp.abs(out - ref)))

    print("KERNEL_OK")
</pallas_src>

<mosaic_0001>
module attributes {stable_mosaic.version = 11 : i64} {
  func.func @_linear_kernel_fused(%arg0: i32, %arg1: i32, %arg2: i32, %arg3: memref<16x32xbf16, #tpu.memory_space<vmem>>, %arg4: memref<32x128xbf16, #tpu.memory_space<vmem>>, %arg5: memref<1x128xf32, #tpu.memory_space<vmem>>, %arg6: memref<16x128xf32, #tpu.memory_space<vmem>>) attributes {dimension_semantics = [#tpu.dimension_semantics<parallel>, #tpu.dimension_semantics<parallel>, #tpu.dimension_semantics<arbitrary>], iteration_bounds = array<i64: 1, 1, 1>, scalar_prefetch = 0 : i64, scratch_operands = 0 : i64, tpu.core_type = #tpu.core_type<tc>, window_params = [{transform_indices = @transform_0, window_bounds = array<i64: 16, 32>}, {transform_indices = @transform_1, window_bounds = array<i64: 32, 128>}, {transform_indices = @transform_2, window_bounds = array<i64: 1, 128>}, {transform_indices = @transform_3, window_bounds = array<i64: 16, 128>}]} {
    %c0 = arith.constant 0 : index
    %c0_0 = arith.constant 0 : index
    %0 = vector.load %arg3[%c0, %c0_0] : memref<16x32xbf16, #tpu.memory_space<vmem>>, vector<16x32xbf16>
    %c0_1 = arith.constant 0 : index
    %c0_2 = arith.constant 0 : index
    %1 = vector.load %arg4[%c0_1, %c0_2] : memref<32x128xbf16, #tpu.memory_space<vmem>>, vector<32x128xbf16>
    %cst = arith.constant dense<0.000000e+00> : vector<16x128xf32>
    %2 = tpu.matmul %0, %1, %cst {dimension_numbers = #tpu.dot_dimension_numbers<[1], [0], [0], [1], [0, 0, 1, 1], [], []>} : vector<16x32xbf16>, vector<32x128xbf16>, vector<16x128xf32> -> vector<16x128xf32>
    %c0_3 = arith.constant 0 : index
    %c0_4 = arith.constant 0 : index
    %3 = vector.load %arg5[%c0_3, %c0_4] : memref<1x128xf32, #tpu.memory_space<vmem>>, vector<1x128xf32>
    %4 = vector.broadcast %3 : vector<1x128xf32> to vector<16x128xf32>
    %5 = arith.addf %2, %4 : vector<16x128xf32>
    %c0_5 = arith.constant 0 : index
    %c0_6 = arith.constant 0 : index
    %6 = vector.load %arg6[%c0_5, %c0_6] : memref<16x128xf32, #tpu.memory_space<vmem>>, vector<16x128xf32>
    tpu.vector_store %arg6[%c0_5, %c0_6], %5 {strides = array<i32>} : memref<16x128xf32, #tpu.memory_space<vmem>>, vector<16x128xf32>,
    return
  }
  func.func @transform_0(%arg0: i32, %arg1: i32, %arg2: i32) -> (i32, i32) {
    %c0_i32 = arith.constant 0 : i32
    return %arg0, %arg2 : i32, i32
  }
  func.func @transform_1(%arg0: i32, %arg1: i32, %arg2: i32) -> (i32, i32) {
    %c0_i32 = arith.constant 0 : i32
    return %arg2, %arg1 : i32, i32
  }
  func.func @transform_2(%arg0: i32, %arg1: i32, %arg2: i32) -> (i32, i32) {
    %c0_i32 = arith.constant 0 : i32
    %c0_i32_0 = arith.constant 0 : i32
    return %c0_i32, %arg1 : i32, i32
  }
  func.func @transform_3(%arg0: i32, %arg1: i32, %arg2: i32) -> (i32, i32) {
    %c0_i32 = arith.constant 0 : i32
    return %arg0, %arg1 : i32, i32
  }
}

</mosaic_0001>

<llo_original>
// kernel: tpu_custom_call.1
$region0: #{tpu_custom_call.1}
  #allocation0 [shape = 'u32[]', space=smem, size = 0x4, offset = 0x4, fixed_abs, tag = 'smem constant byte address 0x4 - core index']
  #allocation1 [shape = 'u32[144,128]{1,0:T(1,128)}', space=vmem, size = 0x12000, scoped, tag = 'internal scratch']
  %s0 = inlined_call_operand.hbm [shape: bf16[16,32], index: 0, kind: input, shape index: {}]
  %s1 = inlined_call_operand.hbm [shape: bf16[32,128], index: 1, kind: input, shape index: {}]
  %s2 = inlined_call_operand.vmem [shape: f32[1,128], index: 2, kind: input, shape index: {}]
  %s3 = inlined_call_operand.hbm [shape: f32[16,128], index: 3, kind: output, shape index: {}]
  %s4 = sld [smem:[#allocation0]]
  $region30: #{tpu_custom_call.1} parent=0
    _
  %s6 = ssub.s32 1, %s4
  %s7 = scalar_select 0, %s6, %s4
  $region1: #{tpu_custom_call.1} parent=0
    #allocation2 [shape = 'u8[4096]{0}', space=vmem, size = 0x1000, scoped, tag = 'input window, operand 0, single buffered']
    #allocation3 [shape = 's32[1]{0}', space=sflag, size = 0x4, scoped, tag = 'scoped memory for tpu_custom_call.1']
    #allocation4 [shape = 's32[1]{0}', space=sflag, size = 0x4, scoped, tag = 'scoped memory for tpu_custom_call.1']
    #allocation5 [shape = 'u8[8192]{0}', space=vmem, size = 0x2000, scoped, tag = 'input window, operand 1, single buffered']
    #allocation6 [shape = 's32[1]{0}', space=sflag, size = 0x4, scoped, tag = 'scoped memory for tpu_custom_call.1']
    #allocation7 [shape = 'u8[8192]{0}', space=vmem, size = 0x2000, scoped, tag = 'output window, operand 0, single buffered']
    %8 = vsyncpa [#allocation3], 0
    %9 = vsyncpa [#allocation6], 0
    %10 = vsyncpa [#allocation4], 0
    // Predicated region
    $region2: #{tpu_custom_call.1} parent=1 // pred_check
      _
    $region3: #{tpu_custom_call.1} parent=1 // pred_check_branch
      %12 = sbr.rel (0) target = $region5
    $region4: #{tpu_custom_call.1} parent=1 // pred_region
      %s14 = ssub.s32 128, 128
      %15 = vsyncadd [#allocation3], %s14
      %s16 = sshll.u32 [#allocation2], 4
      %s17 = int_to_ptr.vmem [resolvable:$true] %s16
      %22 = dma.hbm_to_vmem [thread:$0]  %s0, 128, %s17, [#allocation3], 64, 64, 4
    $region5: #{tpu_custom_call.1} parent=1 // pred_fallthru
      _
    // Predicated region
    $region6: #{tpu_custom_call.1} parent=1 // pred_check
      _
    $region7: #{tpu_custom_call.1} parent=1 // pred_check_branch
      %24 = sbr.rel (0) target = $region9
    $region8: #{tpu_custom_call.1} parent=1 // pred_region
      %s26 = ssub.s32 256, 256
      %27 = vsyncadd [#allocation6], %s26
      %s28 = sshll.u32 [#allocation5], 4
      %s29 = int_to_ptr.vmem [resolvable:$true] %s28
      %34 = dma.hbm_to_vmem [thread:$0]  %s1, 256, %s29, [#allocation6], 64, 64, 4
    $region9: #{tpu_custom_call.1} parent=1 // pred_fallthru
      _
    // Predicated region
    $region10: #{tpu_custom_call.1} parent=1 // pred_check
      _
    $region11: #{tpu_custom_call.1} parent=1 // pred_check_branch
      %36 = sbr.rel (0) target = $region13
    $region12: #{tpu_custom_call.1} parent=1 // pred_region
      _
    $region13: #{tpu_custom_call.1} parent=1 // pred_fallthru
      _
    // Predicated region
    $region14: #{tpu_custom_call.1} parent=1 // pred_check
      _
    $region15: #{tpu_custom_call.1} parent=1 // pred_check_branch
      %38 = sbr.rel (0) target = $region17
    $region16: #{tpu_custom_call.1} parent=1 // pred_region
      %39 = dma.done [#allocation3], 128
    $region17: #{tpu_custom_call.1} parent=1 // pred_fallthru
      _
    // Predicated region
    $region18: #{tpu_custom_call.1} parent=1 // pred_check
      _
    $region19: #{tpu_custom_call.1} parent=1 // pred_check_branch
      %41 = sbr.rel (0) target = $region21
    $region20: #{tpu_custom_call.1} parent=1 // pred_region
      %42 = dma.done [#allocation6], 256
    $region21: #{tpu_custom_call.1} parent=1 // pred_fallthru
      _
    %v44 = vld [vmem:[#allocation2] sm:$0xf]
    %v45 = vld [vmem:[#allocation2 + $0x4] sm:$0xf]
    %v46 = vld [vmem:[#allocation5] sm:$0xf]
    %v47 = vld [vmem:[#allocation5 + $0x4] sm:$0xf]
    %v48 = vld [vmem:[#allocation5 + $0x8] sm:$0xf]
    %v49 = vld [vmem:[#allocation5 + $0xc] sm:$0xf]
    %v50 = vld [vmem:[%s2] sm:$0x1]
    %v52 = vlaneseq
    %v53 = vshrl.u32 %v52, 7
    %v54 = vsub.s32 0, %v53
    %v55 = vrot.slane %v50, %v54
    %v59 = vunpack.c.l.b16 %v44
    %v60 = vunpack.c.l.b16 %v45
    %v61 = vpack.c.b16 %v60, %v59
    %v66 = vunpack.c.l.b16 %v46
    %v67 = vunpack.c.l.b16 %v47
    %v68 = vunpack.c.l.b16 %v48
    %v69 = vunpack.c.l.b16 %v49
    %v70 = vpack.c.b16 %v67, %v66
    %v71 = vpack.c.b16 %v69, %v68
    %vm74 = vcmask 261120
    %v76 = vsel %vm74, %v61, 0
    %78 = vmatprep.subr.bf16.mxu0 0
    %79 = vmatpush1.bf16.msra.mxu0 %v70
    %80 = vmatprep.subr.bf16.mxu0 0
    %81 = vmatpush1.bf16.msra.mxu0 %v71
    %82 = vmatprep.subr.bf16.mxu0 0
    %83 = vmatpush1.bf16.msra.mxu0 0
    %84 = vmatprep.subr.bf16.mxu0 0
    %85 = vmatpush1.bf16.msra.mxu0 0
    %86 = vmatprep.subr.bf16.mxu0 0
    %87 = vmatpush1.bf16.msra.mxu0 0
    %88 = vmatprep.subr.bf16.mxu0 0
    %89 = vmatpush1.bf16.msra.mxu0 0
    %90 = vmatprep.subr.bf16.mxu0 0
    %91 = vmatpush1.bf16.msra.mxu0 0
    %92 = vmatprep.subr.bf16.mxu0 0
    %93 = vmatpush1.bf16.msra.mxu0 0
    %94 = vmatprep.subr.bf16.mxu0 0
    %95 = vmatpush1.bf16.msra.mxu0 0
    %96 = vmatprep.subr.bf16.mxu0 0
    %97 = vmatpush1.bf16.msra.mxu0 0
    %98 = vmatprep.subr.bf16.mxu0 0
    %99 = vmatpush1.bf16.msra.mxu0 0
    %100 = vmatprep.subr.bf16.mxu0 0
    %101 = vmatpush1.bf16.msra.mxu0 0
    %102 = vmatprep.subr.bf16.mxu0 0
    %103 = vmatpush1.bf16.msra.mxu0 0
    %104 = vmatprep.subr.bf16.mxu0 0
    %105 = vmatpush1.bf16.msra.mxu0 0
    %106 = vmatprep.subr.bf16.mxu0 0
    %107 = vmatpush1.bf16.msra.mxu0 0
    %108 = vmatprep.subr.bf16.mxu0 0
    %109 = vmatpush1.bf16.msra.mxu0 0
    %110 = vmatprep.mubr.bf16.mxu0 0
    %111 = vmatmul.mubr.bf16.gmra.mrb[0].mxu0 %v76
    %v112 = vpop.f32.mrb[0].mxu0
    %v113 = vadd.f32 %v55, %v112
    %v114 = vpop.f32.mrb[0].mxu0
    %v115 = vpop.f32.mrb[0].mxu0
    %v116 = vadd.f32 %v55, %v115
    %v117 = vpop.f32.mrb[0].mxu0
    %118 = vdwg.mxu0
    %119 = vst [vmem:[#allocation7] sm:$0xff] %v113
    %120 = vst [vmem:[#allocation7 + $0x8] sm:$0xff] %v116
    // Predicated region
    $region22: #{tpu_custom_call.1} parent=1 // pred_check
      _
    $region23: #{tpu_custom_call.1} parent=1 // pred_check_branch
      %122 = sbr.rel (0) target = $region25
    $region24: #{tpu_custom_call.1} parent=1 // pred_region
      %s124 = ssub.s32 256, 256
      %125 = vsyncadd [#allocation4], %s124
      %s126 = sshll.u32 [#allocation7], 4
      %s127 = int_to_ptr.vmem [resolvable:$true] %s126
      %132 = dma.vmem_to_hbm [thread:$0]  %s127, 256, %s3, [#allocation4], 128, 128, 8
    $region25: #{tpu_custom_call.1} parent=1 // pred_fallthru
      _
    // Predicated region
    $region26: #{tpu_custom_call.1} parent=1 // pred_check
      _
    $region27: #{tpu_custom_call.1} parent=1 // pred_check_branch
      %134 = sbr.rel (0) target = $region29
    $region28: #{tpu_custom_call.1} parent=1 // pred_region
      %135 = dma.done [#allocation4], 256
    $region29: #{tpu_custom_call.1} parent=1 // pred_fallthru
      _
    %136 = vsyncpa [#allocation3], 1
    %137 = vsyncpa [#allocation6], 1
    %138 = vsyncpa [#allocation4], 1

</llo_original>
